<compile_context>
chip_gen: v5e
topology: v5e:2x2
jax: 0.10.0
libtpu: 0.0.40
codegen_flags: <defaults>
</compile_context>

<pallas_src>
import functools
import math

import jax
import jax.numpy as jnp
from jax.experimental import pallas as pl
from jax.experimental.pallas import tpu as pltpu


def _round_up(x, m):
    return ((x + m - 1) // m) * m


def _default_tiles():
    """(tile_t, tile_n) per TPU generation; safe fallback (256, 128)."""
    try:
        kind = jax.devices()[0].device_kind.lower()
    except Exception:
        kind = ""
    if "v6" in kind or "v7" in kind:
        # 2x256^2 MXU: 256-wide N, f32 acc (128,256) = 32 vregs.
        return 128, 256
    # v5e & older (4x128 MXU, single vst slot): 128-wide stores, acc (256,128) = 32 vregs.
    return 256, 128


def _vmem_capacity_bytes():
    try:
        return int(pltpu.get_tpu_info().vmem_capacity_bytes)
    except Exception:
        return 64 * 1024 * 1024  # v7x-safe fallback


def _conv1d_kernel(x_ref, w_ref, *rest, K, tt, stride, dilation, folded, has_bias):
    # x_ref : (T_slab, C)            bf16  (C = K*C_in when folded, else C_in)
    # w_ref : (C, tn) or (K, C_in, tn) bf16
    # b_ref : (1, tn)                f32   (only when has_bias)
    # o_ref : (tt, tn)               out dtype
    if has_bias:
        b_ref, o_ref = rest
    else:
        (o_ref,) = rest
        b_ref = None

    i = pl.program_id(2)                                   # time-tile index
    t0 = pl.multiple_of(i * (tt * stride), tt * stride)    # aligned dynamic base

    def window(start):
        if stride == 1:
            return x_ref[pl.ds(start, tt), :]
        return x_ref[pl.ds(start, tt, stride=stride), :]

    if folded:
        # K taps pre-folded into the contraction dim -> a single MXU dot.
        acc = jnp.dot(window(t0), w_ref[...], preferred_element_type=jnp.float32)
    else:
        # Init acc from the first tap (no zeros pass; in-place MXU accumulate on v7x).
        acc = jnp.dot(window(t0), w_ref[0], preferred_element_type=jnp.float32)
        for k in range(1, K):
            acc = acc + jnp.dot(window(t0 + k * dilation), w_ref[k],
                                preferred_element_type=jnp.float32)

    if has_bias:
        acc = acc + b_ref[...]
    o_ref[...] = acc.astype(o_ref.dtype)


def conv1d_pallas(x, weight, bias=None, *, stride=1, padding=0, dilation=1,
                  tile_t=None, tile_n=None, compute_dtype=jnp.bfloat16):
    """x: (B, T, C_in); weight: (C_out, C_in, K); bias: (C_out,) or None.

    Returns (B, T_out, C_out).  MXU math runs in `compute_dtype` (bf16 by
    default) with f32 accumulation; results match f32 conv to bf16 tolerance.
    """
    B, T, C_in = x.shape
    C_out, C_in_w, K = weight.shape
    assert C_in_w == C_in, "weight C_in mismatch"
    out_dtype = x.dtype
    has_bias = bias is not None

    T_out = (T + 2 * padding - dilation * (K - 1) - 1) // stride + 1
    assert T_out > 0, "output length must be positive"

    # --- tile sizes -------------------------------------------------------
    tt_def, tn_def = _default_tiles()
    tile_t = tile_t if tile_t is not None else tt_def
    tile_n = tile_n if tile_n is not None else tn_def

    # 16-row granularity when 16-bit dtypes are involved (sublane packing).
    gran = 16 if (jnp.dtype(compute_dtype).itemsize == 2
                  or jnp.dtype(out_dtype).itemsize == 2) else 8
    tt = min(_round_up(tile_t, gran), _round_up(T_out, gran))
    TB = pl.cdiv(T_out, tt)

    N_pad = _round_up(C_out, 128)                 # lane-dense output
    tn = min(_round_up(tile_n, 128), N_pad)
    if N_pad % tn != 0:
        tn = 128
    NB = N_pad // tn

    folded = (K > 1) and (K * C_in <= 128)

    # --- time padding / slab sizing ----------------------------------------
    T_need = (TB * tt - 1) * stride + 1                 # rows needed at tap 0
    T_reach = T_need + (K - 1) * dilation               # rows reached by last tap
    T_slab = max(T + 2 * padding, T_reach)

    # TODO(synk): fuse this pad/cast into the pallas_call (allow_input_fusion /
    # in-kernel halo masking) to avoid an extra HBM pass over x.
    x_pad = jnp.pad(
        x, ((0, 0), (padding, T_slab - T - padding), (0, 0))
    ).astype(compute_dtype)

    if folded:
        # LHS width K*C_in, same pass as the pad/cast; weight -> (K*C_in, N_pad).
        x_in = jnp.concatenate(
            [x_pad[:, k * dilation:k * dilation + T_need, :] for k in range(K)],
            axis=-1)                                                    # (B, T_need, K*C_in)
        w_in = jnp.transpose(weight, (2, 1, 0)).reshape(K * C_in, C_out)
        w_in = jnp.pad(w_in, ((0, 0), (0, N_pad - C_out))).astype(compute_dtype)
        x_block = (None, T_need, K * C_in)
        w_block = (K * C_in, tn)
    else:
        x_in = x_pad                                                    # (B, T_slab, C_in)
        w_in = jnp.transpose(weight, (2, 1, 0))                         # (K, C_in, C_out)
        w_in = jnp.pad(w_in, ((0, 0), (0, 0), (0, N_pad - C_out))).astype(compute_dtype)
        x_block = (None, T_slab, C_in)
        w_block = (K, C_in, tn)

    if has_bias:
        b2 = jnp.pad(bias.astype(jnp.float32), (0, N_pad - C_out)).reshape(1, N_pad)

    # --- grid ordering (keep the 2-TC split on an even parallel axis) -------
    if B % 2 == 0 or NB == 1:
        grid = (B, NB, TB)
        def _bji(b, j, i):
            return b, j, i
    else:
        grid = (NB, B, TB)
        def _bji(j, b, i):
            return b, j, i

    def x_map(*g):
        b, j, i = _bji(*g)
        return (b, 0, 0)

    def o_map(*g):
        b, j, i = _bji(*g)
        return (b, i, j)

    def b_map(*g):
        b, j, i = _bji(*g)
        return (0, j)

    if folded:
        def w_map(*g):
            b, j, i = _bji(*g)
            return (0, j)
    else:
        def w_map(*g):
            b, j, i = _bji(*g)
            return (0, 0, j)

    # --- VMEM budget / limit -------------------------------------------------
    elem = jnp.dtype(compute_dtype).itemsize
    slab_bytes = int(x_in.shape[1]) * int(x_in.shape[2]) * elem
    w_tile_bytes = (int(w_in.size) // NB) * elem
    out_tile_bytes = tt * tn * jnp.dtype(out_dtype).itemsize
    bias_bytes = N_pad * 4 if has_bias else 0
    vmem_needed = 2 * (slab_bytes + w_tile_bytes + out_tile_bytes + bias_bytes)

    cap = _vmem_capacity_bytes()
    vmem_limit = int(min(0.80 * cap, 100 * 1024 * 1024))
    if vmem_needed + (8 << 20) > vmem_limit:
        # TODO(synk): if even this exceeds physical VMEM (very long T on v7x),
        # switch to a time-windowed x slab with a (K-1)*dilation halo.
        vmem_limit = int(min(cap, vmem_needed + (8 << 20)))

    # --- pallas_call ---------------------------------------------------------
    kernel = functools.partial(
        _conv1d_kernel, K=K, tt=tt, stride=stride, dilation=dilation,
        folded=folded, has_bias=has_bias)

    in_specs = [pl.BlockSpec(x_block, x_map), pl.BlockSpec(w_block, w_map)]
    inputs = [x_in, w_in]
    if has_bias:
        in_specs.append(pl.BlockSpec((1, tn), b_map))
        inputs.append(b2)

    flops = 2 * B * (TB * tt) * (K * C_in) * N_pad
    bytes_accessed = (
        int(x_in.size) * elem + int(w_in.size) * elem + bias_bytes
        + B * TB * tt * N_pad * jnp.dtype(out_dtype).itemsize)

    out = pl.pallas_call(
        kernel,
        out_shape=jax.ShapeDtypeStruct((B, TB * tt, N_pad), out_dtype),
        grid_spec=pltpu.PrefetchScalarGridSpec(
            num_scalar_prefetch=0,
            grid=grid,
            in_specs=in_specs,
            out_specs=pl.BlockSpec((None, tt, tn), o_map),
        ),
        compiler_params=pltpu.CompilerParams(
            dimension_semantics=("parallel", "parallel", "parallel"),
            vmem_limit_bytes=vmem_limit,
        ),
        cost_estimate=pl.CostEstimate(
            flops=int(flops), transcendentals=0, bytes_accessed=int(bytes_accessed)),
    )(*inputs)

    # Skip the extra HBM read+write when no padding was introduced.
    if TB * tt == T_out and N_pad == C_out:
        return out
    return out[:, :T_out, :C_out]


class ConvPallas:
    """Mirror of the PyTorch `Conv` module (Conv1d acting on (B, T, C))."""

    def __init__(self, in_channels, out_channels, kernel_size=1, stride=1,
                 padding=0, dilation=1, bias=True, key=None):
        self.stride = stride
        self.padding = padding
        self.dilation = dilation
        key = key if key is not None else jax.random.PRNGKey(0)
        kw, kb = jax.random.split(key)
        # xavier-uniform init (w_init='linear' -> gain=1), deterministic
        fan_in = in_channels * kernel_size
        fan_out = out_channels * kernel_size
        limit = math.sqrt(6.0 / (fan_in + fan_out))
        self.weight = jax.random.uniform(
            kw, (out_channels, in_channels, kernel_size), jnp.float32, -limit, limit)
        if bias:
            self.bias = jax.random.uniform(
                kb, (out_channels,), jnp.float32, -limit, limit)
        else:
            self.bias = None

    def __call__(self, x):
        return conv1d_pallas(x, self.weight, self.bias,
                             stride=self.stride, padding=self.padding,
                             dilation=self.dilation)


if __name__ == "__main__":
    key = jax.random.PRNGKey(0)
    k_x, k_p = jax.random.split(key)

    B, T, C_in, C_out, K = 2, 16, 8, 16, 3
    x = jax.random.normal(k_x, (B, T, C_in), dtype=jnp.float32)

    conv = ConvPallas(C_in, C_out, kernel_size=K, stride=1, padding=1, key=k_p)
    y = conv(x)
    y = jax.block_until_ready(y)
    assert y.shape == (B, T, C_out), y.shape

    # Reference with the same bf16-input / f32-accumulate math.
    x_pad_bf = jnp.pad(x, ((0, 0), (1, 1), (0, 0))).astype(jnp.bfloat16)
    w_kc = jnp.transpose(conv.weight, (2, 1, 0)).astype(jnp.bfloat16)  # (K, C_in, C_out)
    y_ref = jnp.zeros((B, T, C_out), jnp.float32)
    for k in range(K):
        xs = x_pad_bf[:, k:k + T, :]
        y_ref = y_ref + jnp.einsum(
            'btc,cn->btn', xs, w_kc[k], preferred_element_type=jnp.float32)
    y_ref = y_ref + conv.bias

    assert jnp.allclose(y.astype(jnp.float32), y_ref, atol=2e-2, rtol=2e-2), (
        float(jnp.max(jnp.abs(y.astype(jnp.float32) - y_ref))))

    # Also exercise the no-bias / unfolded-ish path once (kernel_size=1).
    conv1 = ConvPallas(C_in, C_out, kernel_size=1, bias=False, key=k_p)
    y1 = jax.block_until_ready(conv1(x))
    y1_ref = jnp.einsum('btc,cn->btn', x.astype(jnp.bfloat16),
                        jnp.transpose(conv1.weight, (2, 1, 0))[0].astype(jnp.bfloat16),
                        preferred_element_type=jnp.float32)
    assert jnp.allclose(y1.astype(jnp.float32), y1_ref, atol=2e-2, rtol=2e-2)

    print("KERNEL_OK")
</pallas_src>

<mosaic_0001>
module attributes {stable_mosaic.version = 11 : i64} {
  func.func @_conv1d_kernel(%arg0: i32, %arg1: i32, %arg2: i32, %arg3: memref<1x16x24xbf16, #tpu.memory_space<vmem>>, %arg4: memref<24x128xbf16, #tpu.memory_space<vmem>>, %arg5: memref<1x128xf32, #tpu.memory_space<vmem>>, %arg6: memref<1x16x128xf32, #tpu.memory_space<vmem>>) attributes {dimension_semantics = [#tpu.dimension_semantics<parallel>, #tpu.dimension_semantics<parallel>, #tpu.dimension_semantics<parallel>], iteration_bounds = array<i64: 2, 1, 1>, scalar_prefetch = 0 : i64, scratch_operands = 0 : i64, tpu.core_type = #tpu.core_type<tc>, window_params = [{transform_indices = @transform_0, window_bounds = array<i64: 1, 16, 24>}, {transform_indices = @transform_1, window_bounds = array<i64: 24, 128>}, {transform_indices = @transform_2, window_bounds = array<i64: 1, 128>}, {transform_indices = @transform_3, window_bounds = array<i64: 1, 16, 128>}]} {
    %c16_i32 = arith.constant 16 : i32
    %0 = arith.muli %arg2, %c16_i32 : i32
    %1 = tpu.assume_multiple %0, 16 : i32
    %c0 = arith.constant 0 : index
    %2 = arith.index_cast %1 : i32 to index
    %c0_0 = arith.constant 0 : index
    %3 = vector.load %arg3[%c0, %2, %c0_0] : memref<1x16x24xbf16, #tpu.memory_space<vmem>>, vector<1x16x24xbf16>
    %4 = vector.shape_cast %3 : vector<1x16x24xbf16> to vector<16x24xbf16>
    %c0_1 = arith.constant 0 : index
    %c0_2 = arith.constant 0 : index
    %5 = vector.load %arg4[%c0_1, %c0_2] : memref<24x128xbf16, #tpu.memory_space<vmem>>, vector<24x128xbf16>
    %cst = arith.constant dense<0.000000e+00> : vector<16x128xf32>
    %6 = tpu.matmul %4, %5, %cst {dimension_numbers = #tpu.dot_dimension_numbers<[1], [0], [0], [1], [0, 0, 1, 1], [], []>} : vector<16x24xbf16>, vector<24x128xbf16>, vector<16x128xf32> -> vector<16x128xf32>
    %c0_3 = arith.constant 0 : index
    %c0_4 = arith.constant 0 : index
    %7 = vector.load %arg5[%c0_3, %c0_4] : memref<1x128xf32, #tpu.memory_space<vmem>>, vector<1x128xf32>
    %8 = vector.broadcast %7 : vector<1x128xf32> to vector<16x128xf32>
    %9 = arith.addf %6, %8 : vector<16x128xf32>
    %c0_5 = arith.constant 0 : index
    %c0_6 = arith.constant 0 : index
    %c0_7 = arith.constant 0 : index
    %10 = vector.load %arg6[%c0_5, %c0_6, %c0_7] : memref<1x16x128xf32, #tpu.memory_space<vmem>>, vector<1x16x128xf32>
    %11 = vector.shape_cast %10 : vector<1x16x128xf32> to vector<16x128xf32>
    %12 = vector.shape_cast %9 : vector<16x128xf32> to vector<1x16x128xf32>
    tpu.vector_store %arg6[%c0_5, %c0_6, %c0_7], %12 {strides = array<i32>} : memref<1x16x128xf32, #tpu.memory_space<vmem>>, vector<1x16x128xf32>,
    return
  }
  func.func @transform_0(%arg0: i32, %arg1: i32, %arg2: i32) -> (i32, i32, i32) {
    %c0_i32 = arith.constant 0 : i32
    %c0_i32_0 = arith.constant 0 : i32
    %c0_i32_1 = arith.constant 0 : i32
    return %arg0, %c0_i32, %c0_i32_0 : i32, i32, i32
  }
  func.func @transform_1(%arg0: i32, %arg1: i32, %arg2: i32) -> (i32, i32) {
    %c0_i32 = arith.constant 0 : i32
    %c0_i32_0 = arith.constant 0 : i32
    return %c0_i32, %arg1 : i32, i32
  }
  func.func @transform_2(%arg0: i32, %arg1: i32, %arg2: i32) -> (i32, i32) {
    %c0_i32 = arith.constant 0 : i32
    %c0_i32_0 = arith.constant 0 : i32
    return %c0_i32, %arg1 : i32, i32
  }
  func.func @transform_3(%arg0: i32, %arg1: i32, %arg2: i32) -> (i32, i32, i32) {
    %c0_i32 = arith.constant 0 : i32
    return %arg0, %arg2, %arg1 : i32, i32, i32
  }
}

</mosaic_0001>

<llo_original>
// kernel: tpu_custom_call.1
$region0: #{tpu_custom_call.1}
  #allocation0 [shape = 'u32[]', space=smem, size = 0x4, offset = 0x4, fixed_abs, tag = 'smem constant byte address 0x4 - core index']
  #allocation1 [shape = 'u32[72,128]{1,0:T(1,128)}', space=vmem, size = 0x9000, scoped, tag = 'internal scratch']
  %s0 = inlined_call_operand.hbm [shape: bf16[2,16,24], index: 0, kind: input, shape index: {}]
  %s1 = inlined_call_operand.hbm [shape: bf16[24,128], index: 1, kind: input, shape index: {}]
  %s2 = inlined_call_operand.vmem [shape: f32[1,128], index: 2, kind: input, shape index: {}]
  %s3 = inlined_call_operand.hbm [shape: f32[2,16,128], index: 3, kind: output, shape index: {}]
  %s4 = sld [smem:[#allocation0]]
  $region53: #{tpu_custom_call.1} parent=0
    _
  %s6 = ssub.s32 1, %s4
  %s7 = scalar_select 0, %s6, %s4
  $region1: #{tpu_custom_call.1} parent=0
    #allocation2 [shape = 'u8[8192]{0}', space=vmem, size = 0x2000, scoped, tag = 'input window, operand 0']
    #allocation3 [shape = 's32[2]{0}', space=sflag, size = 0x8, scoped, tag = 'scoped memory for tpu_custom_call.1']
    #allocation4 [shape = 's32[2]{0}', space=sflag, size = 0x8, scoped, tag = 'scoped memory for tpu_custom_call.1']
    #allocation5 [shape = 'u8[6144]{0}', space=vmem, size = 0x1800, scoped, tag = 'input window, operand 1, single buffered']
    #allocation6 [shape = 's32[1]{0}', space=sflag, size = 0x4, scoped, tag = 'scoped memory for tpu_custom_call.1']
    #allocation7 [shape = 'u8[16384]{0}', space=vmem, size = 0x4000, scoped, tag = 'output window, operand 0']
    %8 = vsyncpa [#allocation3], 0
    %s9 = scalar_lea.sflag [#allocation3], 1
    %10 = vsyncpa %s9, 0
    %11 = vsyncpa [#allocation6], 0
    %12 = vsyncpa [#allocation4], 0
    %s13 = scalar_lea.sflag [#allocation4], 1
    %14 = vsyncpa %s13, 0
    loop: start=0, step=1, limit=4
    $region2: #{tpu_custom_call.1} parent=1 // loop_pre_header
      _
    $region3: #{tpu_custom_call.1} parent=1 // loop_header
      %s16 = sphi 0, %s20
      %p17 = scmp.ge.s32.totalorder %s16, 4
      %s23 = sphi 0, %s42
      %s24 = sphi 0, %s38
      %s25 = sphi 0, %s34
      %s26 = sphi 0, %s23
      %s27 = sphi 0, %s24
      %s28 = sphi 0, %s25
      %s29 = sphi 0, %s26
      %s30 = sphi 0, %s27
      %s31 = sphi 0, %s28
      %s45 = sphi 0, %s47
      %s48 = sphi 0, %s45
      %s49 = sphi 0, %s48
      %s65 = sphi 0, %s49
      %s71 = sphi 0, %s73
      %s74 = sphi 0, %s71
      %s75 = sphi 0, %s74
      %s91 = sphi 0, %s75
      %s97 = sphi 0, %s99
      %s100 = sphi 0, %s97
      %s101 = sphi 0, %s100
      %s117 = sphi 0, %s101
      %s127 = sphi 0, %s129
      %s130 = sphi 0, %s127
      %s131 = sphi 0, %s130
      %s147 = sphi 0, %s131
    $region4: #{tpu_custom_call.1} parent=1 // loop_header_branch
      %19 = sbr.rel (%p17) target = $region8
    $region5: #{tpu_custom_call.1} parent=1 // loop_body
      %s21 = ssub.s32 %s16, 1
      %s22 = ssub.s32 %s16, 2
      %s32 = sadd.s32 1, %s25
      %p33 = scmp.ge.s32.totalorder %s32, 1
      %s34 = scalar_select %p33, 0, %s32
      %s35 = sadd.s32 1, %s24
      %s36 = scalar_select %p33, %s35, %s24
      %p37 = scmp.ge.s32.totalorder %s36, 1
      %s38 = scalar_select %p37, 0, %s36
      %s39 = sadd.s32 1, %s23
      %s40 = scalar_select %p37, %s39, %s23
      %p41 = scmp.ge.s32.totalorder %s40, 2
      %s42 = scalar_select %p41, 0, %s40
      %s43 = ssub.s32 %s23, %s42
      %p44 = scmp.eq.s32.totalorder %s43, 0
      %s46 = sadd.s32 %s45, 1
      %s47 = scalar_select %p44, %s45, %s46
      %p50 = pneg %p44
      %p51 = scmp.eq.s32.totalorder %s16, 1
      %p52 = por %p50, %p51
      %p53 = scmp.ne.s32.totalorder %s45, %s48
      %p54 = scmp.eq.s32.totalorder %s16, 0
      %p55 = por %p53, %p54
      %p56 = scmp.ne.s32.totalorder %s45, %s48
      %p57 = scmp.eq.s32.totalorder %s21, 1
      %p58 = por %p56, %p57
      %p59 = scmp.ne.s32.totalorder %s48, %s49
      %p60 = scmp.eq.s32.totalorder %s21, 0
      %p61 = por %p59, %p60
      %p62 = scmp.ne.s32.totalorder %s48, %s49
      %p63 = scmp.eq.s32.totalorder %s22, 1
      %p64 = por %p62, %p63
      %p66 = scmp.ne.s32.totalorder %s49, %s65
      %p67 = scmp.eq.s32.totalorder %s22, 0
      %p68 = por %p66, %p67
      %s69 = ssub.s32 %s24, %s38
      %p70 = scmp.eq.s32.totalorder %s69, 0
      %s72 = sadd.s32 %s71, 1
      %s73 = scalar_select %p70, %s71, %s72
      %p76 = pneg %p70
      %p77 = scmp.eq.s32.totalorder %s16, 1
      %p78 = por %p76, %p77
      %p79 = scmp.ne.s32.totalorder %s71, %s74
      %p80 = scmp.eq.s32.totalorder %s16, 0
      %p81 = por %p79, %p80
      %p82 = scmp.ne.s32.totalorder %s71, %s74
      %p83 = scmp.eq.s32.totalorder %s21, 1
      %p84 = por %p82, %p83
      %p85 = scmp.ne.s32.totalorder %s74, %s75
      %p86 = scmp.eq.s32.totalorder %s21, 0
      %p87 = por %p85, %p86
      %p88 = scmp.ne.s32.totalorder %s74, %s75
      %p89 = scmp.eq.s32.totalorder %s22, 1
      %p90 = por %p88, %p89
      %p92 = scmp.ne.s32.totalorder %s75, %s91
      %p93 = scmp.eq.s32.totalorder %s22, 0
      %p94 = por %p92, %p93
      %s95 = ssub.s32 %s24, %s38
      %p96 = scmp.eq.s32.totalorder %s95, 0
      %s98 = sadd.s32 %s97, 1
      %s99 = scalar_select %p96, %s97, %s98
      %p102 = pneg %p96
      %p103 = scmp.eq.s32.totalorder %s16, 1
      %p104 = por %p102, %p103
      %p105 = scmp.ne.s32.totalorder %s97, %s100
      %p106 = scmp.eq.s32.totalorder %s16, 0
      %p107 = por %p105, %p106
      %p108 = scmp.ne.s32.totalorder %s97, %s100
      %p109 = scmp.eq.s32.totalorder %s21, 1
      %p110 = por %p108, %p109
      %p111 = scmp.ne.s32.totalorder %s100, %s101
      %p112 = scmp.eq.s32.totalorder %s21, 0
      %p113 = por %p111, %p112
      %p114 = scmp.ne.s32.totalorder %s100, %s101
      %p115 = scmp.eq.s32.totalorder %s22, 1
      %p116 = por %p114, %p115
      %p118 = scmp.ne.s32.totalorder %s101, %s117
      %p119 = scmp.eq.s32.totalorder %s22, 0
      %p120 = por %p118, %p119
      %s121 = ssub.s32 %s23, %s42
      %s122 = ssub.s32 %s25, %s34
      %s123 = sor.u32 %s121, %s122
      %s124 = ssub.s32 %s24, %s38
      %s125 = sor.u32 %s123, %s124
      %p126 = scmp.eq.s32.totalorder %s125, 0
      %s128 = sadd.s32 %s127, 1
      %s129 = scalar_select %p126, %s127, %s128
      %p132 = pneg %p126
      %p133 = scmp.eq.s32.totalorder %s16, 1
      %p134 = por %p132, %p133
      %p135 = scmp.ne.s32.totalorder %s127, %s130
      %p136 = scmp.eq.s32.totalorder %s16, 0
      %p137 = por %p135, %p136
      %p138 = scmp.ne.s32.totalorder %s127, %s130
      %p139 = scmp.eq.s32.totalorder %s21, 1
      %p140 = por %p138, %p139
      %p141 = scmp.ne.s32.totalorder %s130, %s131
      %p142 = scmp.eq.s32.totalorder %s21, 0
      %p143 = por %p141, %p142
      %p144 = scmp.ne.s32.totalorder %s130, %s131
      %p145 = scmp.eq.s32.totalorder %s22, 1
      %p146 = por %p144, %p145
      %p148 = scmp.ne.s32.totalorder %s131, %s147
      %p149 = scmp.eq.s32.totalorder %s22, 0
      %p150 = por %p148, %p149
      %p151 = scmp.le.s32.totalorder 1, %s16
      %p152 = scmp.lt.s32.totalorder %s16, 3
      %p153 = pnand %p151, %p152
      %p154 = pneg %p153
      // Predicated region
      $region9: #{tpu_custom_call.1} parent=5 // pred_check
        _
      $region10: #{tpu_custom_call.1} parent=5 // pred_check_branch
        %156 = sbr.rel (%p153) target = $region12
      $region11: #{tpu_custom_call.1} parent=5 // pred_region
        %s157 = ssub.s32 %s16, 1
        // Predicated region
        $region13: #{tpu_custom_call.1} parent=11 // pred_check
          %p158 = pneg %p87
        $region14: #{tpu_custom_call.1} parent=11 // pred_check_branch
          %160 = sbr.rel (%p158) target = $region16
        $region15: #{tpu_custom_call.1} parent=11 // pred_region
          %162 = vsyncadd [#allocation6], 0
          %s163 = smul.addr %s27, 4
          %s164 = scalar_lea.hbm %s1, %s163
          %s165 = sshll.u32 %s164, 4
          %s166 = int_to_ptr.hbm [resolvable:$true] %s165
          %s167 = sshll.u32 [#allocation5], 4
          %s168 = int_to_ptr.vmem [resolvable:$true] %s167
          %173 = dma.hbm_to_vmem [thread:$0]  %s166, 192, %s168, [#allocation6], 64, 64, 4
        $region16: #{tpu_custom_call.1} parent=11 // pred_fallthru
          _
        // Predicated region
        $region17: #{tpu_custom_call.1} parent=11 // pred_check
          %p174 = pneg %p113
        $region18: #{tpu_custom_call.1} parent=11 // pred_check_branch
          %176 = sbr.rel (%p174) target = $region20
        $region19: #{tpu_custom_call.1} parent=11 // pred_region
          %p177 = scmp.lt.s32.totalorder %s27, 0
          %s178 = scalar_select %p177, %s27, 0
          %s179 = scalar_lea.vmem %s2, %s178
        $region20: #{tpu_custom_call.1} parent=11 // pred_fallthru
          _
      $region12: #{tpu_custom_call.1} parent=5 // pred_fallthru
        _
      %p180 = scmp.lt.s32.totalorder %s16, 2
      // Predicated region
      $region21: #{tpu_custom_call.1} parent=5 // pred_check
        %p181 = pneg %p180
      $region22: #{tpu_custom_call.1} parent=5 // pred_check_branch
        %183 = sbr.rel (%p181) target = $region24
      $region23: #{tpu_custom_call.1} parent=5 // pred_region
        // Predicated region
        $region25: #{tpu_custom_call.1} parent=23 // pred_check
          %p184 = pneg %p55
        $region26: #{tpu_custom_call.1} parent=23 // pred_check_branch
          %186 = sbr.rel (%p184) target = $region28
        $region27: #{tpu_custom_call.1} parent=23 // pred_region
          %s187 = sand.u32 %s45, 1
          %s188 = scalar_lea.sflag [#allocation3], %s187
          %s189 = sand.u32 %s45, 1
          %s190 = smul.addr %s189, 8
          %s191 = scalar_lea.vmem [#allocation2], %s190
          %193 = vsyncadd %s188, 0
          %s194 = smul.addr %s23, 2
          %s195 = smul.addr %s194, 4
          %s196 = scalar_lea.hbm %s0, %s195
          %s197 = sshll.u32 %s196, 4
          %s198 = int_to_ptr.hbm [resolvable:$true] %s197
          %s199 = sshll.u32 %s191, 4
          %s200 = int_to_ptr.vmem [resolvable:$true] %s199
          %205 = dma.hbm_to_vmem [thread:$0]  %s198, 128, %s200, %s188, 64, 64, 4
        $region28: #{tpu_custom_call.1} parent=23 // pred_fallthru
          _
      $region24: #{tpu_custom_call.1} parent=5 // pred_fallthru
        _
      %p206 = scmp.le.s32.totalorder 1, %s16
      %p207 = scmp.lt.s32.totalorder %s16, 3
      %p208 = pnand %p206, %p207
      %p209 = pneg %p208
      // Predicated region
      $region29: #{tpu_custom_call.1} parent=5 // pred_check
        _
      $region30: #{tpu_custom_call.1} parent=5 // pred_check_branch
        %211 = sbr.rel (%p208) target = $region32
      $region31: #{tpu_custom_call.1} parent=5 // pred_region
        %s212 = ssub.s32 %s16, 1
        %s213 = sand.u32 %s48, 1
        %s214 = scalar_lea.sflag [#allocation3], %s213
        %s215 = sand.u32 %s48, 1
        %s216 = smul.addr %s215, 8
        %s217 = scalar_lea.vmem [#allocation2], %s216
        // Predicated region
        $region33: #{tpu_custom_call.1} parent=31 // pred_check
          %p218 = pneg %p61
        $region34: #{tpu_custom_call.1} parent=31 // pred_check_branch
          %220 = sbr.rel (%p218) target = $region36
        $region35: #{tpu_custom_call.1} parent=31 // pred_region
          %222 = dma.done %s214, 128
        $region36: #{tpu_custom_call.1} parent=31 // pred_fallthru
          _
        // Predicated region
        $region37: #{tpu_custom_call.1} parent=31 // pred_check
          %p223 = pneg %p87
        $region38: #{tpu_custom_call.1} parent=31 // pred_check_branch
          %225 = sbr.rel (%p223) target = $region40
        $region39: #{tpu_custom_call.1} parent=31 // pred_region
          %227 = dma.done [#allocation6], 192
        $region40: #{tpu_custom_call.1} parent=31 // pred_fallthru
          _
        %s228 = sand.u32 %s48, 1
        %s229 = scalar_lea.sflag [#allocation3], %s228
        %s230 = sand.u32 %s48, 1
        %s231 = smul.addr %s230, 8
        %s232 = scalar_lea.vmem [#allocation2], %s231
        %p233 = pneg %p61
        %p234 = pneg %p58
        %p235 = pneg %p87
        %p236 = pneg %p84
        %p237 = scmp.lt.s32.totalorder %s27, 0
        %s238 = scalar_select %p237, %s27, 0
        %s239 = scalar_lea.vmem %s2, %s238
        %p240 = pneg %p113
        %p241 = pneg %p110
        %p242 = pneg %p143
        %p243 = pneg %p140
        %s244 = sand.u32 %s130, 1
        %s245 = scalar_lea.sflag [#allocation4], %s244
        %s246 = sand.u32 %s130, 1
        %s247 = smul.addr %s246, 16
        %s248 = scalar_lea.vmem [#allocation7], %s247
        %p249 = scmp.lt.s32.totalorder %s27, 0
        %s250 = scalar_select %p249, %s27, 0
        %s251 = scalar_lea.vmem %s2, %s250
        %s252 = smul.u32 2, %s28
        %s254 = smul.u32 %s28, 16
        %s255 = sshra.s32 %s254, 3
        %s256 = sand.u32 %s254, 7
        %s257 = smul.addr %s255, 4
        %s258 = scalar_lea.vmem %s217, %s257 [#allocation2]
        %v259 = vld [vmem:[%s258] sm:$0xf]
        %v260 = vld [vmem:[%s258 + $0x4] sm:$0xf]
        %v261 = vld [vmem:[#allocation5] sm:$0xf]
        %v262 = vld [vmem:[#allocation5 + $0x4] sm:$0xf]
        %v263 = vld [vmem:[#allocation5 + $0x8] sm:$0xf]
        %v264 = vld [vmem:[%s251] sm:$0x1]
        %v266 = vperm.slane %v264, 0
        %v270 = vunpack.c.l.b16 %v259
        %v271 = vunpack.c.l.b16 %v260
        %v272 = vpack.c.b16 %v271, %v270
        %v276 = vunpack.c.l.b16 %v261
        %v277 = vunpack.c.l.b16 %v262
        %v278 = vunpack.c.l.b16 %v263
        %v279 = vpack.c.b16 %v277, %v276
        %v280 = vpack.c.b16 %v278, %v278
        %vm282 = vcmask 195584
        %v284 = vsel %vm282, %v272, 0
        %vm286 = vcmask 1043456
        %v288 = vsel %vm286, %v280, 0
        %290 = vmatpush.bf16.msra.mxu0 0
        %291 = vmatpush.bf16.msra.mxu0 0
        %292 = vmatpush.bf16.msra.mxu0 0
        %293 = vmatpush.bf16.msra.mxu0 0
        %294 = vmatpush.bf16.msra.mxu0 0
        %295 = vmatpush.bf16.msra.mxu0 0
        %296 = vmatpush.bf16.msra.mxu0 %v288
        %297 = vmatpush.bf16.msra.mxu0 %v279
        %298 = vmatmul.bf16.gmra.mxu0 %v284
        %v299 = vpop.f32.mrf.mxu0
        %v300 = vadd.f32 %v266, %v299
        %v301 = vpop.f32.mrf.mxu0
        %v302 = vadd.f32 %v266, %v301
        %303 = vdwg.mxu0
        %304 = vst [vmem:[%s248] sm:$0xff] %v300
        %305 = vst [vmem:[%s248 + $0x8] sm:$0xff] %v302
        %s306 = sand.u32 %s130, 1
        %s307 = scalar_lea.sflag [#allocation4], %s306
        %s308 = sand.u32 %s130, 1
        %s309 = smul.addr %s308, 16
        %s310 = scalar_lea.vmem [#allocation7], %s309
        // Predicated region
        $region41: #{tpu_custom_call.1} parent=31 // pred_check
          %p311 = pneg %p140
        $region42: #{tpu_custom_call.1} parent=31 // pred_check_branch
          %313 = sbr.rel (%p311) target = $region44
        $region43: #{tpu_custom_call.1} parent=31 // pred_region
          %s314 = smul.u32 2, %s28
          %316 = vsyncadd %s307, 0
          %s317 = sadd.s32 %s27, %s314
          %s318 = smul.addr %s26, 2
          %s319 = sadd.s32 %s317, %s318
          %s320 = smul.addr %s319, 8
          %s321 = scalar_lea.hbm %s3, %s320
          %s322 = sshll.u32 %s310, 4
          %s323 = int_to_ptr.vmem [resolvable:$true] %s322
          %s324 = sshll.u32 %s321, 4
          %s325 = int_to_ptr.hbm [resolvable:$true] %s324
          %330 = dma.vmem_to_hbm [thread:$0]  %s323, 256, %s325, %s307, 128, 128, 8
        $region44: #{tpu_custom_call.1} parent=31 // pred_fallthru
          _
      $region32: #{tpu_custom_call.1} parent=5 // pred_fallthru
        _
      %p331 = scmp.le.s32.totalorder 2, %s16
      // Predicated region
      $region45: #{tpu_custom_call.1} parent=5 // pred_check
        %p332 = pneg %p331
      $region46: #{tpu_custom_call.1} parent=5 // pred_check_branch
        %334 = sbr.rel (%p332) target = $region48
      $region47: #{tpu_custom_call.1} parent=5 // pred_region
        %s335 = ssub.s32 %s16, 2
        // Predicated region
        $region49: #{tpu_custom_call.1} parent=47 // pred_check
          %p336 = pneg %p146
        $region50: #{tpu_custom_call.1} parent=47 // pred_check_branch
          %338 = sbr.rel (%p336) target = $region52
        $region51: #{tpu_custom_call.1} parent=47 // pred_region
          %s339 = sand.u32 %s131, 1
          %s340 = scalar_lea.sflag [#allocation4], %s339
          %s341 = sand.u32 %s131, 1
          %s342 = smul.addr %s341, 16
          %s343 = scalar_lea.vmem [#allocation7], %s342
          %345 = dma.done %s340, 256
        $region52: #{tpu_custom_call.1} parent=47 // pred_fallthru
          _
      $region48: #{tpu_custom_call.1} parent=5 // pred_fallthru
        _
    $region6: #{tpu_custom_call.1} parent=1 // loop_footer
      %s20 = sadd.s32 1, %s16
    $region7: #{tpu_custom_call.1} parent=1 // loop_footer_branch
      %15 = sbr.rel target = $region3
    $region8: #{tpu_custom_call.1} parent=1 // loop_exit
      _
    %346 = vsyncpa [#allocation3], 1
    %s347 = scalar_lea.sflag [#allocation3], 1
    %348 = vsyncpa %s347, 1
    %349 = vsyncpa [#allocation6], 1
    %350 = vsyncpa [#allocation4], 1
    %s351 = scalar_lea.sflag [#allocation4], 1
    %352 = vsyncpa %s351, 1

</llo_original>
